<compile_context>
chip_gen: v5e
topology: v5e:2x2
jax: 0.10.0
libtpu: 0.0.40
codegen_flags: <defaults>
</compile_context>

<pallas_src>
import jax
import jax.numpy as jnp
from jax.experimental import pallas as pl
from jax.experimental.pallas import tpu as pltpu


HIDDEN = 256


def _round_up(n, m):
    return ((n + m - 1) // m) * m


def _default_block_batch(batch):
    """Batch tile size: big tiles to amortize per-step overhead, rounded to
    256 (whole 256x256 MXU passes on v6e/v7x, multiple of 128 for v5e), and
    clamped so batches > 256 give >= 2 grid steps (v7x megacore sharding)."""
    if batch <= 256:
        return _round_up(max(batch, 1), 8)
    tb = min(2048, _round_up(batch, 256))
    tb = min(tb, _round_up(pl.cdiv(batch, 2), 256))
    return tb


def v_network_kernel(x_ref, w1_ref, b1_ref, w2_ref, b2_ref, w3_ref, b3_ref,
                     out_ref):
    """Fused 3-layer MLP on one batch tile.

    x_ref:  (TB, S)     f32 (cast to compute dtype in-kernel)
    w1_ref: (S, 256)    compute dtype (bf16 or f32)
    b1_ref: (1, 256)    f32
    w2_ref: (256, 256)  compute dtype
    b2_ref: (1, 256)    f32
    w3_ref: (1, 256)    f32 (fc3 weight as a row; VPU path)
    b3_ref: (1, 1)      f32, SMEM scalar
    out_ref:(1, TB)     f32, lane-dense (batch rows along lanes)
    """
    # Cast after load: the VPU cast hides under MXU slack, and avoids a
    # separate wrapper-side HBM pass over x.
    x = x_ref[...].astype(w1_ref.dtype)

    # fc1 + bias + ReLU (MXU, f32 accumulation); store intermediate in the
    # compute dtype to halve any spill traffic before fc2.
    h1 = jnp.dot(x, w1_ref[...], preferred_element_type=jnp.float32)
    h1 = jnp.maximum(h1 + b1_ref[...], 0.0).astype(w2_ref.dtype)

    # fc2 + bias + ReLU (MXU, f32 accumulation); keep h2 in f32 for the f32
    # VPU head (v5e has no bf16 VPU).
    h2 = jnp.dot(h1, w2_ref[...], preferred_element_type=jnp.float32)
    h2 = jnp.maximum(h2 + b2_ref[...], 0.0)                        # (TB, 256) f32

    # fc3: N=1 output -> VPU broadcast-multiply + XLU lane reduction (exact
    # in f32), b3 read as an SMEM scalar.
    red = jnp.sum(h2 * w3_ref[...], axis=-1, keepdims=True) + b3_ref[0, 0]  # (TB, 1)

    # Lane-dense store: relayout the (TB, 1) column to a (1, TB) row (XLU has
    # slack) so the writeback is unmasked full-lane stores.
    out_ref[...] = red.reshape(out_ref.shape).astype(out_ref.dtype)


def prepare_params(params, *, compute_dtype=jnp.bfloat16):
    """One-time parameter prep (do this at init, NOT per forward call):
    cast fc1/fc2 weights to the MXU compute dtype, keep biases f32, reshape
    fc3 weight to a (1, 256) row for the VPU path and b3 to a (1, 1) scalar."""
    return {
        "w1": params["w1"].astype(compute_dtype),                       # (S, 256)
        "b1": params["b1"].reshape(1, HIDDEN).astype(jnp.float32),      # (1, 256)
        "w2": params["w2"].astype(compute_dtype),                       # (256, 256)
        "b2": params["b2"].reshape(1, HIDDEN).astype(jnp.float32),      # (1, 256)
        "w3_row": params["w3"].reshape(1, HIDDEN).astype(jnp.float32),  # (1, 256)
        "b3": params["b3"].reshape(1, 1).astype(jnp.float32),           # (1, 1)
    }


def v_network_forward(x, prepared, *, block_batch=None):
    """Run the fused V_network forward pass.

    x:        (batch, state_dim) float32
    prepared: output of prepare_params(params)
    """
    batch, state_dim = x.shape

    if block_batch is None:
        block_batch = _default_block_batch(batch)
    block_batch = _round_up(block_batch, 8)        # f32 sublane granularity

    num_tiles = pl.cdiv(batch, block_batch)        # partial last block handled by Pallas
    grid = (num_tiles,)

    w1, b1 = prepared["w1"], prepared["b1"]
    w2, b2 = prepared["w2"], prepared["b2"]
    w3_row, b3 = prepared["w3_row"], prepared["b3"]

    # Every weight/bias index_map returns block 0 -> identical block across
    # grid steps -> resident in VMEM, DMA'd from HBM only once.
    resident = lambda a: pl.BlockSpec(a.shape, lambda i: (0,) * a.ndim)

    w_itemsize = jnp.dtype(w1.dtype).itemsize
    rows = num_tiles * block_batch
    cost = pl.CostEstimate(
        flops=2 * rows * (state_dim * HIDDEN + HIDDEN * HIDDEN + HIDDEN),
        transcendentals=0,
        bytes_accessed=(batch * state_dim * 4                        # x (f32)
                        + (state_dim + HIDDEN) * HIDDEN * w_itemsize # w1, w2
                        + 3 * HIDDEN * 4 + 4                         # b1, b2, w3, b3
                        + rows * 4),                                 # out
    )

    out = pl.pallas_call(
        v_network_kernel,
        out_shape=jax.ShapeDtypeStruct((num_tiles, block_batch), jnp.float32),
        grid=grid,
        in_specs=[
            pl.BlockSpec((block_batch, state_dim), lambda i: (i, 0)),   # x (tiled)
            resident(w1),
            resident(b1),
            resident(w2),
            resident(b2),
            resident(w3_row),
            pl.BlockSpec(memory_space=pltpu.MemorySpace.SMEM),          # b3 scalar
        ],
        out_specs=pl.BlockSpec((1, block_batch), lambda i: (i, 0)),     # lane-dense
        compiler_params=pltpu.CompilerParams(
            dimension_semantics=("parallel",)),                         # v7x megacore
        cost_estimate=cost,
    )(x, w1, b1, w2, b2, w3_row, b3)

    # (num_tiles, TB) lane-dense -> (batch, 1); out-of-range rows sliced off.
    return out.reshape(-1)[:batch].reshape(batch, 1)


def init_params(key, state_dim):
    """Deterministic init mirroring torch.nn.Linear default (U[-1/sqrt(fan_in), +])."""
    k1, k2, k3, k4, k5, k6 = jax.random.split(key, 6)

    def lin(kw, kb, fan_in, fan_out):
        bound = 1.0 / jnp.sqrt(jnp.float32(fan_in))
        w = jax.random.uniform(kw, (fan_in, fan_out), jnp.float32, -bound, bound)
        b = jax.random.uniform(kb, (1, fan_out), jnp.float32, -bound, bound)
        return w, b

    w1, b1 = lin(k1, k2, state_dim, HIDDEN)
    w2, b2 = lin(k3, k4, HIDDEN, HIDDEN)
    w3, b3 = lin(k5, k6, HIDDEN, 1)
    return {"w1": w1, "b1": b1, "w2": w2, "b2": b2, "w3": w3, "b3": b3}


def v_network_ref(x, p):
    h1 = jnp.maximum(x @ p["w1"] + p["b1"], 0.0)
    h2 = jnp.maximum(h1 @ p["w2"] + p["b2"], 0.0)
    return h2 @ p["w3"] + p["b3"]


if __name__ == "__main__":
    key = jax.random.PRNGKey(0)
    k_x, k_p = jax.random.split(key)

    batch, state_dim = 8, 16
    x = jax.random.normal(k_x, (batch, state_dim), jnp.float32)
    params = init_params(k_p, state_dim)
    ref = v_network_ref(x, params)

    # f32 MXU path: tight match to the JAX reference.
    p_f32 = prepare_params(params, compute_dtype=jnp.float32)
    out_f32 = jax.block_until_ready(v_network_forward(x, p_f32))
    assert out_f32.shape == (batch, 1), out_f32.shape
    assert jnp.allclose(out_f32, ref, atol=1e-5, rtol=1e-5), "f32 mismatch vs ref"

    # Default bf16 MXU path (f32 accumulation): loose check.
    p_bf16 = prepare_params(params)
    out_bf16 = jax.block_until_ready(v_network_forward(x, p_bf16))
    assert out_bf16.shape == (batch, 1), out_bf16.shape
    assert bool(jnp.all(jnp.isfinite(out_bf16)))
    assert jnp.allclose(out_bf16, ref, atol=2e-1, rtol=1e-1), "bf16 mismatch vs ref"

    # Multi-tile grid with a non-divisible batch (exercises partial last block,
    # pipelined x tiles and the >=2-step megacore split).
    batch2 = 600
    x2 = jax.random.normal(k_x, (batch2, state_dim), jnp.float32)
    ref2 = v_network_ref(x2, params)
    out2 = jax.block_until_ready(v_network_forward(x2, p_bf16))
    assert out2.shape == (batch2, 1), out2.shape
    assert jnp.allclose(out2, ref2, atol=2e-1, rtol=1e-1), "bf16 multi-tile mismatch"

    print("KERNEL_OK")
</pallas_src>

<mosaic_0001>
module attributes {stable_mosaic.version = 11 : i64} {
  func.func @v_network_kernel(%arg0: i32, %arg1: memref<8x16xf32, #tpu.memory_space<vmem>>, %arg2: memref<16x256xf32, #tpu.memory_space<vmem>>, %arg3: memref<1x256xf32, #tpu.memory_space<vmem>>, %arg4: memref<256x256xf32, #tpu.memory_space<vmem>>, %arg5: memref<1x256xf32, #tpu.memory_space<vmem>>, %arg6: memref<1x256xf32, #tpu.memory_space<vmem>>, %arg7: memref<1x1xf32, #tpu.memory_space<smem>>, %arg8: memref<1x8xf32, #tpu.memory_space<vmem>>) attributes {dimension_semantics = [#tpu.dimension_semantics<parallel>], iteration_bounds = array<i64: 1>, scalar_prefetch = 0 : i64, scratch_operands = 0 : i64, tpu.core_type = #tpu.core_type<tc>, window_params = [{transform_indices = @transform_0, window_bounds = array<i64: 8, 16>}, {pipeline_mode = #tpu.pipeline_mode<synchronous>, transform_indices = @transform_1, window_bounds = array<i64: 16, 256>}, {pipeline_mode = #tpu.pipeline_mode<synchronous>, transform_indices = @transform_2, window_bounds = array<i64: 1, 256>}, {pipeline_mode = #tpu.pipeline_mode<synchronous>, transform_indices = @transform_3, window_bounds = array<i64: 256, 256>}, {pipeline_mode = #tpu.pipeline_mode<synchronous>, transform_indices = @transform_4, window_bounds = array<i64: 1, 256>}, {pipeline_mode = #tpu.pipeline_mode<synchronous>, transform_indices = @transform_5, window_bounds = array<i64: 1, 256>}, {transform_indices = @transform_6, window_bounds = array<i64: 1, 1>}, {transform_indices = @transform_7, window_bounds = array<i64: 1, 8>}]} {
    %c0 = arith.constant 0 : index
    %c0_0 = arith.constant 0 : index
    %0 = vector.load %arg1[%c0, %c0_0] : memref<8x16xf32, #tpu.memory_space<vmem>>, vector<8x16xf32>
    %c0_1 = arith.constant 0 : index
    %c0_2 = arith.constant 0 : index
    %1 = vector.load %arg2[%c0_1, %c0_2] : memref<16x256xf32, #tpu.memory_space<vmem>>, vector<16x256xf32>
    %cst = arith.constant dense<0.000000e+00> : vector<8x256xf32>
    %2 = tpu.matmul %0, %1, %cst {dimension_numbers = #tpu.dot_dimension_numbers<[1], [0], [0], [1], [0, 0, 1, 1], [], []>} : vector<8x16xf32>, vector<16x256xf32>, vector<8x256xf32> -> vector<8x256xf32>
    %c0_3 = arith.constant 0 : index
    %c0_4 = arith.constant 0 : index
    %3 = vector.load %arg3[%c0_3, %c0_4] : memref<1x256xf32, #tpu.memory_space<vmem>>, vector<1x256xf32>
    %4 = vector.broadcast %3 : vector<1x256xf32> to vector<8x256xf32>
    %5 = arith.addf %2, %4 : vector<8x256xf32>
    %cst_5 = arith.constant 0.000000e+00 : f32
    %6 = vector.broadcast %cst_5 : f32 to vector<8x256xf32>
    %7 = arith.maximumf %5, %6 : vector<8x256xf32>
    %c0_6 = arith.constant 0 : index
    %c0_7 = arith.constant 0 : index
    %8 = vector.load %arg4[%c0_6, %c0_7] : memref<256x256xf32, #tpu.memory_space<vmem>>, vector<256x256xf32>
    %cst_8 = arith.constant dense<0.000000e+00> : vector<8x256xf32>
    %9 = tpu.matmul %7, %8, %cst_8 {dimension_numbers = #tpu.dot_dimension_numbers<[1], [0], [0], [1], [0, 0, 1, 1], [], []>} : vector<8x256xf32>, vector<256x256xf32>, vector<8x256xf32> -> vector<8x256xf32>
    %c0_9 = arith.constant 0 : index
    %c0_10 = arith.constant 0 : index
    %10 = vector.load %arg5[%c0_9, %c0_10] : memref<1x256xf32, #tpu.memory_space<vmem>>, vector<1x256xf32>
    %11 = vector.broadcast %10 : vector<1x256xf32> to vector<8x256xf32>
    %12 = arith.addf %9, %11 : vector<8x256xf32>
    %cst_11 = arith.constant 0.000000e+00 : f32
    %13 = vector.broadcast %cst_11 : f32 to vector<8x256xf32>
    %14 = arith.maximumf %12, %13 : vector<8x256xf32>
    %c0_12 = arith.constant 0 : index
    %c0_13 = arith.constant 0 : index
    %15 = vector.load %arg6[%c0_12, %c0_13] : memref<1x256xf32, #tpu.memory_space<vmem>>, vector<1x256xf32>
    %16 = vector.broadcast %15 : vector<1x256xf32> to vector<8x256xf32>
    %17 = arith.mulf %14, %16 : vector<8x256xf32>
    %cst_14 = arith.constant dense<0.000000e+00> : vector<8xf32>
    %18 = vector.multi_reduction <add>, %17, %cst_14 [1] : vector<8x256xf32> to vector<8xf32>
    %19 = vector.shape_cast %18 : vector<8xf32> to vector<8x1xf32>
    %c0_15 = arith.constant 0 : index
    %c0_16 = arith.constant 0 : index
    %20 = memref.load %arg7[%c0_15, %c0_16] : memref<1x1xf32, #tpu.memory_space<smem>>
    %21 = vector.broadcast %20 : f32 to vector<8x1xf32>
    %22 = arith.addf %19, %21 : vector<8x1xf32>
    %23 = vector.shape_cast %22 : vector<8x1xf32> to vector<1x8xf32>
    %c0_17 = arith.constant 0 : index
    %c0_18 = arith.constant 0 : index
    %24 = vector.load %arg8[%c0_17, %c0_18] : memref<1x8xf32, #tpu.memory_space<vmem>>, vector<1x8xf32>
    tpu.vector_store %arg8[%c0_17, %c0_18], %23 {strides = array<i32>} : memref<1x8xf32, #tpu.memory_space<vmem>>, vector<1x8xf32>,
    return
  }
  func.func @transform_0(%arg0: i32) -> (i32, i32) {
    %c0_i32 = arith.constant 0 : i32
    %c0_i32_0 = arith.constant 0 : i32
    return %arg0, %c0_i32 : i32, i32
  }
  func.func @transform_1(%arg0: i32) -> (i32, i32) {
    %c0_i32 = arith.constant 0 : i32
    %c0_i32_0 = arith.constant 0 : i32
    %c0_i32_1 = arith.constant 0 : i32
    return %c0_i32, %c0_i32_0 : i32, i32
  }
  func.func @transform_2(%arg0: i32) -> (i32, i32) {
    %c0_i32 = arith.constant 0 : i32
    %c0_i32_0 = arith.constant 0 : i32
    %c0_i32_1 = arith.constant 0 : i32
    return %c0_i32, %c0_i32_0 : i32, i32
  }
  func.func @transform_3(%arg0: i32) -> (i32, i32) {
    %c0_i32 = arith.constant 0 : i32
    %c0_i32_0 = arith.constant 0 : i32
    %c0_i32_1 = arith.constant 0 : i32
    return %c0_i32, %c0_i32_0 : i32, i32
  }
  func.func @transform_4(%arg0: i32) -> (i32, i32) {
    %c0_i32 = arith.constant 0 : i32
    %c0_i32_0 = arith.constant 0 : i32
    %c0_i32_1 = arith.constant 0 : i32
    return %c0_i32, %c0_i32_0 : i32, i32
  }
  func.func @transform_5(%arg0: i32) -> (i32, i32) {
    %c0_i32 = arith.constant 0 : i32
    %c0_i32_0 = arith.constant 0 : i32
    %c0_i32_1 = arith.constant 0 : i32
    return %c0_i32, %c0_i32_0 : i32, i32
  }
  func.func @transform_6(%arg0: i32) -> (i32, i32) {
    %c0_i32 = arith.constant 0 : i32
    %c0_i32_0 = arith.constant 0 : i32
    %c0_i32_1 = arith.constant 0 : i32
    return %c0_i32, %c0_i32_0 : i32, i32
  }
  func.func @transform_7(%arg0: i32) -> (i32, i32) {
    %c0_i32 = arith.constant 0 : i32
    %c0_i32_0 = arith.constant 0 : i32
    return %arg0, %c0_i32 : i32, i32
  }
}

</mosaic_0001>

<llo_original>
// kernel: tpu_custom_call.1
$region0: #{tpu_custom_call.1}
  #allocation0 [shape = 'u32[]', space=smem, size = 0x4, offset = 0x4, fixed_abs, tag = 'smem constant byte address 0x4 - core index']
  #allocation1 [shape = 'u32[72,128]{1,0:T(1,128)}', space=vmem, size = 0x9000, scoped, tag = 'internal scratch']
  #allocation2 [shape = 'f32[1,1]{1,0:T(1,128)S(6)}', space=smem, size = 0x200, scoped, tag = 'scoped memory for tpu_custom_call.1']
  %s0 = inlined_call_operand.hbm [shape: f32[8,16], index: 0, kind: input, shape index: {}]
  %s1 = inlined_call_operand.hbm [shape: f32[16,256], index: 1, kind: input, shape index: {}]
  %s2 = inlined_call_operand.vmem [shape: f32[1,256], index: 2, kind: input, shape index: {}]
  %s3 = inlined_call_operand.hbm [shape: f32[256,256], index: 3, kind: input, shape index: {}]
  %s4 = inlined_call_operand.vmem [shape: f32[1,256], index: 4, kind: input, shape index: {}]
  %s5 = inlined_call_operand.vmem [shape: f32[1,256], index: 5, kind: input, shape index: {}]
  %s6 = inlined_call_operand.<no memory space> [shape: f32[1,1], index: 6, kind: input, shape index: {}]
  %s7 = inlined_call_operand.hbm [shape: f32[1,8], index: 7, kind: output, shape index: {}]
  %s8 = sld [smem:[#allocation0]]
  $region50: #{tpu_custom_call.1} parent=0
    _
  %s10 = ssub.s32 1, %s8
  %s11 = scalar_select 0, %s10, %s8
  %12 = sst [smem:[#allocation2]] %s6
  $region1: #{tpu_custom_call.1} parent=0
    #allocation3 [shape = 'u8[4096]{0}', space=vmem, size = 0x1000, scoped, tag = 'input window, operand 0, single buffered']
    #allocation4 [shape = 's32[1]{0}', space=sflag, size = 0x4, scoped, tag = 'scoped memory for tpu_custom_call.1']
    #allocation5 [shape = 's32[1]{0}', space=sflag, size = 0x4, scoped, tag = 'scoped memory for tpu_custom_call.1']
    #allocation6 [shape = 'u8[16384]{0}', space=vmem, size = 0x4000, scoped, tag = 'input window, operand 1, single buffered']
    #allocation7 [shape = 's32[1]{0}', space=sflag, size = 0x4, scoped, tag = 'scoped memory for tpu_custom_call.1']
    #allocation8 [shape = 'u8[262144]{0}', space=vmem, size = 0x40000, scoped, tag = 'input window, operand 3, single buffered']
    #allocation9 [shape = 'u8[512]{0}', space=vmem, size = 0x400, scoped, tag = 'output window, operand 0, single buffered']
    %13 = vsyncpa [#allocation4], 0
    %14 = vsyncpa [#allocation7], 0
    %15 = vsyncpa [#allocation5], 0
    // Predicated region
    $region2: #{tpu_custom_call.1} parent=1 // pred_check
      _
    $region3: #{tpu_custom_call.1} parent=1 // pred_check_branch
      %17 = sbr.rel (0) target = $region5
    $region4: #{tpu_custom_call.1} parent=1 // pred_region
      %19 = vsyncadd [#allocation4], 0
      %s21 = sshll.u32 %s0, 4
      %s22 = int_to_ptr.hbm [resolvable:$true] %s21
      %s23 = sshll.u32 [#allocation3], 4
      %s24 = int_to_ptr.vmem [resolvable:$true] %s23
      %26 = dma.hbm_to_vmem [thread:$0]  %s22, 128, %s24, [#allocation4]
    $region5: #{tpu_custom_call.1} parent=1 // pred_fallthru
      _
    // Predicated region
    $region6: #{tpu_custom_call.1} parent=1 // pred_check
      _
    $region7: #{tpu_custom_call.1} parent=1 // pred_check_branch
      %28 = sbr.rel (0) target = $region9
    $region8: #{tpu_custom_call.1} parent=1 // pred_region
      %30 = vsyncadd [#allocation7], 0
      %s31 = sshll.u32 %s1, 4
      %s32 = int_to_ptr.hbm [resolvable:$true] %s31
      %s33 = sshll.u32 [#allocation6], 4
      %s34 = int_to_ptr.vmem [resolvable:$true] %s33
      %39 = dma.hbm_to_vmem [thread:$0]  %s32, 512, %s34, [#allocation7], 256, 256, 16
    $region9: #{tpu_custom_call.1} parent=1 // pred_fallthru
      _
    // Predicated region
    $region10: #{tpu_custom_call.1} parent=1 // pred_check
      _
    $region11: #{tpu_custom_call.1} parent=1 // pred_check_branch
      %41 = sbr.rel (0) target = $region13
    $region12: #{tpu_custom_call.1} parent=1 // pred_region
      _
    $region13: #{tpu_custom_call.1} parent=1 // pred_fallthru
      _
    // Predicated region
    $region14: #{tpu_custom_call.1} parent=1 // pred_check
      _
    $region15: #{tpu_custom_call.1} parent=1 // pred_check_branch
      %43 = sbr.rel (0) target = $region17
    $region16: #{tpu_custom_call.1} parent=1 // pred_region
      %45 = vsyncadd [#allocation7], 0
      %s46 = sshll.u32 %s3, 4
      %s47 = int_to_ptr.hbm [resolvable:$true] %s46
      %s48 = sshll.u32 [#allocation8], 4
      %s49 = int_to_ptr.vmem [resolvable:$true] %s48
      %54 = dma.hbm_to_vmem [thread:$0]  %s47, 8192, %s49, [#allocation7], 256, 256, 16
    $region17: #{tpu_custom_call.1} parent=1 // pred_fallthru
      _
    // Predicated region
    $region18: #{tpu_custom_call.1} parent=1 // pred_check
      _
    $region19: #{tpu_custom_call.1} parent=1 // pred_check_branch
      %56 = sbr.rel (0) target = $region21
    $region20: #{tpu_custom_call.1} parent=1 // pred_region
      _
    $region21: #{tpu_custom_call.1} parent=1 // pred_fallthru
      _
    // Predicated region
    $region22: #{tpu_custom_call.1} parent=1 // pred_check
      _
    $region23: #{tpu_custom_call.1} parent=1 // pred_check_branch
      %58 = sbr.rel (0) target = $region25
    $region24: #{tpu_custom_call.1} parent=1 // pred_region
      _
    $region25: #{tpu_custom_call.1} parent=1 // pred_fallthru
      _
    // Predicated region
    $region26: #{tpu_custom_call.1} parent=1 // pred_check
      _
    $region27: #{tpu_custom_call.1} parent=1 // pred_check_branch
      %60 = sbr.rel (0) target = $region29
    $region28: #{tpu_custom_call.1} parent=1 // pred_region
      _
    $region29: #{tpu_custom_call.1} parent=1 // pred_fallthru
      _
    // Predicated region
    $region30: #{tpu_custom_call.1} parent=1 // pred_check
      _
    $region31: #{tpu_custom_call.1} parent=1 // pred_check_branch
      %62 = sbr.rel (0) target = $region33
    $region32: #{tpu_custom_call.1} parent=1 // pred_region
      %64 = dma.done [#allocation4], 128
    $region33: #{tpu_custom_call.1} parent=1 // pred_fallthru
      _
    // Predicated region
    $region34: #{tpu_custom_call.1} parent=1 // pred_check
      _
    $region35: #{tpu_custom_call.1} parent=1 // pred_check_branch
      %66 = sbr.rel (0) target = $region37
    $region36: #{tpu_custom_call.1} parent=1 // pred_region
      %68 = dma.done [#allocation7], 512
    $region37: #{tpu_custom_call.1} parent=1 // pred_fallthru
      _
    // Predicated region
    $region38: #{tpu_custom_call.1} parent=1 // pred_check
      _
    $region39: #{tpu_custom_call.1} parent=1 // pred_check_branch
      %70 = sbr.rel (0) target = $region41
    $region40: #{tpu_custom_call.1} parent=1 // pred_region
      %72 = dma.done [#allocation7], 8192
    $region41: #{tpu_custom_call.1} parent=1 // pred_fallthru
      _
    %v73 = vld [vmem:[#allocation3] sm:$0xff]
    %v74 = vld [vmem:[#allocation6] sm:$0xff]
    %v75 = vld [vmem:[#allocation6 + $0x8] sm:$0xff]
    %v76 = vld [vmem:[#allocation6 + $0x10] sm:$0xff]
    %v77 = vld [vmem:[#allocation6 + $0x18] sm:$0xff]
    %v78 = vld [vmem:[%s2] sm:$0x3]
    %v80 = vperm.slane %v78, 0
    %v81 = vperm.slane %v78, 1
    %vm84 = vcmask 130048
    %v86 = vsel %vm84, %v73, 0
    %88 = vmatpush.msra.mxu0 0.0
    %89 = vmatpush.msra.mxu0 0.0
    %90 = vmatpush.msra.mxu0 0.0
    %91 = vmatpush.msra.mxu0 0.0
    %92 = vmatpush.msra.mxu0 0.0
    %93 = vmatpush.msra.mxu0 0.0
    %94 = vmatpush.msra.mxu0 0.0
    %95 = vmatpush.msra.mxu0 0.0
    %96 = vmatpush.msra.mxu0 0.0
    %97 = vmatpush.msra.mxu0 0.0
    %98 = vmatpush.msra.mxu0 0.0
    %99 = vmatpush.msra.mxu0 0.0
    %100 = vmatpush.msra.mxu0 0.0
    %101 = vmatpush.msra.mxu0 0.0
    %102 = vmatpush.msra.mxu0 %v76
    %103 = vmatpush.msra.mxu0 %v74
    %104 = vmatmul.f32.gmra.mxu0 %v86
    %v105 = vpop.f32.mrf.mxu0
    %v106 = vadd.f32 %v80, %v105
    %107 = vdwg.mxu0
    %108 = vmatpush.msra.mxu0 0.0
    %109 = vmatpush.msra.mxu0 0.0
    %110 = vmatpush.msra.mxu0 0.0
    %111 = vmatpush.msra.mxu0 0.0
    %112 = vmatpush.msra.mxu0 0.0
    %113 = vmatpush.msra.mxu0 0.0
    %114 = vmatpush.msra.mxu0 0.0
    %115 = vmatpush.msra.mxu0 0.0
    %116 = vmatpush.msra.mxu0 0.0
    %117 = vmatpush.msra.mxu0 0.0
    %118 = vmatpush.msra.mxu0 0.0
    %119 = vmatpush.msra.mxu0 0.0
    %120 = vmatpush.msra.mxu0 0.0
    %121 = vmatpush.msra.mxu0 0.0
    %122 = vmatpush.msra.mxu0 %v77
    %123 = vmatpush.msra.mxu0 %v75
    %124 = vmatmul.f32.gmra.mxu0 %v86
    %v125 = vpop.f32.mrf.mxu0
    %v126 = vadd.f32 %v81, %v125
    %127 = vdwg.mxu0
    %v128 = vmax.f32 %v106, 0.0
    %v129 = vmax.f32 %v126, 0.0
    %v130 = vld [vmem:[#allocation8] sm:$0xff]
    %v131 = vld [vmem:[#allocation8 + $0x8] sm:$0xff]
    %v132 = vld [vmem:[#allocation8 + $0x10] sm:$0xff]
    %v133 = vld [vmem:[#allocation8 + $0x18] sm:$0xff]
    %v134 = vld [vmem:[#allocation8 + $0x20] sm:$0xff]
    %v135 = vld [vmem:[#allocation8 + $0x28] sm:$0xff]
    %v136 = vld [vmem:[#allocation8 + $0x30] sm:$0xff]
    %v137 = vld [vmem:[#allocation8 + $0x38] sm:$0xff]
    %v138 = vld [vmem:[#allocation8 + $0x40] sm:$0xff]
    %v139 = vld [vmem:[#allocation8 + $0x48] sm:$0xff]
    %v140 = vld [vmem:[#allocation8 + $0x50] sm:$0xff]
    %v141 = vld [vmem:[#allocation8 + $0x58] sm:$0xff]
    %v142 = vld [vmem:[#allocation8 + $0x60] sm:$0xff]
    %v143 = vld [vmem:[#allocation8 + $0x68] sm:$0xff]
    %v144 = vld [vmem:[#allocation8 + $0x70] sm:$0xff]
    %v145 = vld [vmem:[#allocation8 + $0x78] sm:$0xff]
    %v146 = vld [vmem:[#allocation8 + $0x80] sm:$0xff]
    %v147 = vld [vmem:[#allocation8 + $0x88] sm:$0xff]
    %v148 = vld [vmem:[#allocation8 + $0x90] sm:$0xff]
    %v149 = vld [vmem:[#allocation8 + $0x98] sm:$0xff]
    %v150 = vld [vmem:[#allocation8 + $0xa0] sm:$0xff]
    %v151 = vld [vmem:[#allocation8 + $0xa8] sm:$0xff]
    %v152 = vld [vmem:[#allocation8 + $0xb0] sm:$0xff]
    %v153 = vld [vmem:[#allocation8 + $0xb8] sm:$0xff]
    %v154 = vld [vmem:[#allocation8 + $0xc0] sm:$0xff]
    %v155 = vld [vmem:[#allocation8 + $0xc8] sm:$0xff]
    %v156 = vld [vmem:[#allocation8 + $0xd0] sm:$0xff]
    %v157 = vld [vmem:[#allocation8 + $0xd8] sm:$0xff]
    %v158 = vld [vmem:[#allocation8 + $0xe0] sm:$0xff]
    %v159 = vld [vmem:[#allocation8 + $0xe8] sm:$0xff]
    %v160 = vld [vmem:[#allocation8 + $0xf0] sm:$0xff]
    %v161 = vld [vmem:[#allocation8 + $0xf8] sm:$0xff]
    %v162 = vld [vmem:[#allocation8 + $0x100] sm:$0xff]
    %v163 = vld [vmem:[#allocation8 + $0x108] sm:$0xff]
    %v164 = vld [vmem:[#allocation8 + $0x110] sm:$0xff]
    %v165 = vld [vmem:[#allocation8 + $0x118] sm:$0xff]
    %v166 = vld [vmem:[#allocation8 + $0x120] sm:$0xff]
    %v167 = vld [vmem:[#allocation8 + $0x128] sm:$0xff]
    %v168 = vld [vmem:[#allocation8 + $0x130] sm:$0xff]
    %v169 = vld [vmem:[#allocation8 + $0x138] sm:$0xff]
    %v170 = vld [vmem:[#allocation8 + $0x140] sm:$0xff]
    %v171 = vld [vmem:[#allocation8 + $0x148] sm:$0xff]
    %v172 = vld [vmem:[#allocation8 + $0x150] sm:$0xff]
    %v173 = vld [vmem:[#allocation8 + $0x158] sm:$0xff]
    %v174 = vld [vmem:[#allocation8 + $0x160] sm:$0xff]
    %v175 = vld [vmem:[#allocation8 + $0x168] sm:$0xff]
    %v176 = vld [vmem:[#allocation8 + $0x170] sm:$0xff]
    %v177 = vld [vmem:[#allocation8 + $0x178] sm:$0xff]
    %v178 = vld [vmem:[#allocation8 + $0x180] sm:$0xff]
    %v179 = vld [vmem:[#allocation8 + $0x188] sm:$0xff]
    %v180 = vld [vmem:[#allocation8 + $0x190] sm:$0xff]
    %v181 = vld [vmem:[#allocation8 + $0x198] sm:$0xff]
    %v182 = vld [vmem:[#allocation8 + $0x1a0] sm:$0xff]
    %v183 = vld [vmem:[#allocation8 + $0x1a8] sm:$0xff]
    %v184 = vld [vmem:[#allocation8 + $0x1b0] sm:$0xff]
    %v185 = vld [vmem:[#allocation8 + $0x1b8] sm:$0xff]
    %v186 = vld [vmem:[#allocation8 + $0x1c0] sm:$0xff]
    %v187 = vld [vmem:[#allocation8 + $0x1c8] sm:$0xff]
    %v188 = vld [vmem:[#allocation8 + $0x1d0] sm:$0xff]
    %v189 = vld [vmem:[#allocation8 + $0x1d8] sm:$0xff]
    %v190 = vld [vmem:[#allocation8 + $0x1e0] sm:$0xff]
    %v191 = vld [vmem:[#allocation8 + $0x1e8] sm:$0xff]
    %v192 = vld [vmem:[#allocation8 + $0x1f0] sm:$0xff]
    %v193 = vld [vmem:[#allocation8 + $0x1f8] sm:$0xff]
    %v194 = vld [vmem:[%s4] sm:$0x3]
    %v196 = vperm.slane %v194, 0
    %v197 = vperm.slane %v194, 1
    %200 = vmatpush.msra.mxu0 %v160
    %201 = vmatpush.msra.mxu0 %v158
    %202 = vmatpush.msra.mxu0 %v156
    %203 = vmatpush.msra.mxu0 %v154
    %204 = vmatpush.msra.mxu0 %v152
    %205 = vmatpush.msra.mxu0 %v150
    %206 = vmatpush.msra.mxu0 %v148
    %207 = vmatpush.msra.mxu0 %v146
    %208 = vmatpush.msra.mxu0 %v144
    %209 = vmatpush.msra.mxu0 %v142
    %210 = vmatpush.msra.mxu0 %v140
    %211 = vmatpush.msra.mxu0 %v138
    %212 = vmatpush.msra.mxu0 %v136
    %213 = vmatpush.msra.mxu0 %v134
    %214 = vmatpush.msra.mxu0 %v132
    %215 = vmatpush.msra.mxu0 %v130
    %216 = vmatmul.f32.gmra.mxu0 %v128
    %v217 = vpop.f32.mrf.mxu0
    %v218 = vadd.f32 %v196, %v217
    %219 = vdwg.mxu0
    %220 = vmatpush.msra.mxu0 %v192
    %221 = vmatpush.msra.mxu0 %v190
    %222 = vmatpush.msra.mxu0 %v188
    %223 = vmatpush.msra.mxu0 %v186
    %224 = vmatpush.msra.mxu0 %v184
    %225 = vmatpush.msra.mxu0 %v182
    %226 = vmatpush.msra.mxu0 %v180
    %227 = vmatpush.msra.mxu0 %v178
    %228 = vmatpush.msra.mxu0 %v176
    %229 = vmatpush.msra.mxu0 %v174
    %230 = vmatpush.msra.mxu0 %v172
    %231 = vmatpush.msra.mxu0 %v170
    %232 = vmatpush.msra.mxu0 %v168
    %233 = vmatpush.msra.mxu0 %v166
    %234 = vmatpush.msra.mxu0 %v164
    %235 = vmatpush.msra.mxu0 %v162
    %236 = vmatmul.f32.gmra.mxu0 %v129
    %v237 = vpop.f32.mrf.mxu0
    %v238 = vadd.f32 %v218, %v237
    %239 = vdwg.mxu0
    %240 = vmatpush.msra.mxu0 %v161
    %241 = vmatpush.msra.mxu0 %v159
    %242 = vmatpush.msra.mxu0 %v157
    %243 = vmatpush.msra.mxu0 %v155
    %244 = vmatpush.msra.mxu0 %v153
    %245 = vmatpush.msra.mxu0 %v151
    %246 = vmatpush.msra.mxu0 %v149
    %247 = vmatpush.msra.mxu0 %v147
    %248 = vmatpush.msra.mxu0 %v145
    %249 = vmatpush.msra.mxu0 %v143
    %250 = vmatpush.msra.mxu0 %v141
    %251 = vmatpush.msra.mxu0 %v139
    %252 = vmatpush.msra.mxu0 %v137
    %253 = vmatpush.msra.mxu0 %v135
    %254 = vmatpush.msra.mxu0 %v133
    %255 = vmatpush.msra.mxu0 %v131
    %256 = vmatmul.f32.gmra.mxu0 %v128
    %v257 = vpop.f32.mrf.mxu0
    %v258 = vadd.f32 %v197, %v257
    %259 = vdwg.mxu0
    %260 = vmatpush.msra.mxu0 %v193
    %261 = vmatpush.msra.mxu0 %v191
    %262 = vmatpush.msra.mxu0 %v189
    %263 = vmatpush.msra.mxu0 %v187
    %264 = vmatpush.msra.mxu0 %v185
    %265 = vmatpush.msra.mxu0 %v183
    %266 = vmatpush.msra.mxu0 %v181
    %267 = vmatpush.msra.mxu0 %v179
    %268 = vmatpush.msra.mxu0 %v177
    %269 = vmatpush.msra.mxu0 %v175
    %270 = vmatpush.msra.mxu0 %v173
    %271 = vmatpush.msra.mxu0 %v171
    %272 = vmatpush.msra.mxu0 %v169
    %273 = vmatpush.msra.mxu0 %v167
    %274 = vmatpush.msra.mxu0 %v165
    %275 = vmatpush.msra.mxu0 %v163
    %276 = vmatmul.f32.gmra.mxu0 %v129
    %v277 = vpop.f32.mrf.mxu0
    %v278 = vadd.f32 %v258, %v277
    %279 = vdwg.mxu0
    %v280 = vmax.f32 %v238, 0.0
    %v281 = vmax.f32 %v278, 0.0
    %v282 = vld [vmem:[%s5] sm:$0x3]
    %v284 = vperm.slane %v282, 0
    %v285 = vperm.slane %v282, 1
    %v288 = vmul.f32 %v280, %v284
    %v289 = vmul.f32 %v281, %v285
    %v290 = vadd.f32 %v288, %v289
    %291 = vadd.xlane.f32.xlu0 %v290
    %v292 = vpop.xlane.xlu0 %291
    %s293 = sld [smem:[#allocation2]]
    %v294 = vstv %s293
    %v295 = vadd.f32 %v292, %v294
    %v297 = vlaneseq
    %v298 = vand.u32 %v297, 127
    %v299 = vperm.slane %v295, %v298
    %vm301 = vcmask 57344
    %302 = vst.msk [vmem:[#allocation9] sm:$0x1] %vm301, %v299
    // Predicated region
    $region42: #{tpu_custom_call.1} parent=1 // pred_check
      _
    $region43: #{tpu_custom_call.1} parent=1 // pred_check_branch
      %304 = sbr.rel (0) target = $region45
    $region44: #{tpu_custom_call.1} parent=1 // pred_region
      %306 = vsyncadd [#allocation5], 0
      %s308 = sshll.u32 [#allocation9], 4
      %s309 = int_to_ptr.vmem [resolvable:$true] %s308
      %s310 = sshll.u32 %s7, 4
      %s311 = int_to_ptr.hbm [resolvable:$true] %s310
      %313 = dma.vmem_to_hbm [thread:$0]  %s309, 16, %s311, [#allocation5]
    $region45: #{tpu_custom_call.1} parent=1 // pred_fallthru
      _
    // Predicated region
    $region46: #{tpu_custom_call.1} parent=1 // pred_check
      _
    $region47: #{tpu_custom_call.1} parent=1 // pred_check_branch
      %315 = sbr.rel (0) target = $region49
    $region48: #{tpu_custom_call.1} parent=1 // pred_region
      %317 = dma.done [#allocation5], 16
    $region49: #{tpu_custom_call.1} parent=1 // pred_fallthru
      _
    %318 = vsyncpa [#allocation4], 1
    %319 = vsyncpa [#allocation7], 1
    %320 = vsyncpa [#allocation5], 1

</llo_original>
